<compile_context>
chip_gen: v6e
topology: v6e:2x2x1
jax: 0.10.0
libtpu: 0.0.40
codegen_flags: <defaults>
</compile_context>

<pallas_src>
import functools

import numpy as np
import jax
import jax.numpy as jnp
from jax import lax
from jax.experimental import pallas as pl
from jax.experimental.pallas import tpu as pltpu


def _cdiv(a, b):
    return (a + b - 1) // b


def _round_up(a, b):
    return _cdiv(a, b) * b


# ----------------------------------------------------------------------------
# Parameter / mask construction (glue, plain JAX / numpy)
# ----------------------------------------------------------------------------
def _made_masks(dim, hidden_dims):
    """Deterministic MADE connectivity masks, sequential input ordering."""
    deg_in = np.arange(1, dim + 1)
    degrees = [deg_in]
    for h in hidden_dims:
        if dim > 1:
            degrees.append((np.arange(h) % (dim - 1)) + 1)
        else:
            degrees.append(np.ones(h, dtype=np.int64))
    hidden_masks = []
    for l in range(len(hidden_dims)):
        d_prev, d_next = degrees[l], degrees[l + 1]
        hidden_masks.append((d_next[None, :] >= d_prev[:, None]).astype(np.float32))
    d_last = degrees[-1]
    out_mask = (deg_in[None, :] > d_last[:, None]).astype(np.float32)
    return hidden_masks, out_mask


def init_maf_params(key, dim, hidden_dims):
    """Deterministic synthetic MADE parameters (masks pre-applied to weights)."""
    assert len(hidden_dims) == 2, "kernel below is written for 2 hidden layers"
    h0, h1 = hidden_dims
    hidden_masks, out_mask = _made_masks(dim, hidden_dims)

    def _w(k, fan_in, fan_out):
        return (jax.random.normal(k, (fan_in, fan_out), jnp.float32)
                / jnp.sqrt(jnp.float32(fan_in)))

    k1, k2, k3, k4, k5, k6, k7, k8 = jax.random.split(key, 8)
    w1 = _w(k1, dim, h0) * jnp.asarray(hidden_masks[0])
    b1 = 0.01 * jax.random.normal(k2, (1, h0), jnp.float32)
    w2 = _w(k3, h0, h1) * jnp.asarray(hidden_masks[1])
    b2 = 0.01 * jax.random.normal(k4, (1, h1), jnp.float32)
    # MADE output layer has width 2*dim; split into mu / logp heads
    # (equivalent to torch.chunk(out, 2, dim=1) on the fused output).
    w_mu = _w(k5, h1, dim) * jnp.asarray(out_mask)
    b_mu = 0.01 * jax.random.normal(k6, (1, dim), jnp.float32)
    w_lp = _w(k7, h1, dim) * jnp.asarray(out_mask)
    b_lp = 0.01 * jax.random.normal(k8, (1, dim), jnp.float32)
    return dict(w1=w1, b1=b1, w2=w2, b2=b2,
                w_mu=w_mu, b_mu=b_mu, w_lp=w_lp, b_lp=b_lp)


def prepare_maf_params(params, dim, reverse):
    """One-time param prep for the transposed-layout kernel.

    - fuse mu / logp heads into one (2D, H1) transposed weight + (2D, 1) bias,
      folding the 0.5 of exp(0.5*logp) / 0.5*sum(logp) into the logp half,
    - transpose all weights so the kernel computes w^T @ x^T directly,
    - cast matmul weights to bf16 (mask zeros survive exactly); biases stay f32,
    - build the exact (D, D) f32 transpose matrices used by the kernel:
      t_in = I (batch-major x -> xT), t_out = I or the anti-diagonal (uT ->
      batch-major u, with the reverse=True feature flip folded in).
    """
    w_lp_half = 0.5 * params["w_lp"]
    b_lp_half = 0.5 * params["b_lp"]
    w_head = jnp.concatenate([params["w_mu"], w_lp_half], axis=1)   # (H1, 2D)
    b_head = jnp.concatenate([params["b_mu"], b_lp_half], axis=1)   # (1, 2D)
    eye = jnp.eye(dim, dtype=jnp.float32)
    t_out = eye[::-1, :] if reverse else eye
    return dict(
        w1t=params["w1"].T.astype(jnp.bfloat16),      # (H0, D)
        b1t=params["b1"].T.astype(jnp.float32),       # (H0, 1)
        w2t=params["w2"].T.astype(jnp.bfloat16),      # (H1, H0)
        b2t=params["b2"].T.astype(jnp.float32),       # (H1, 1)
        wht=w_head.T.astype(jnp.bfloat16),            # (2D, H1)
        bht=b_head.T.astype(jnp.float32),             # (2D, 1)
        t_in=eye,                                     # (D, D)
        t_out=t_out,                                  # (D, D)
    )


# ----------------------------------------------------------------------------
# Pallas kernel: MADE forward + (x - mu) * exp(0.5*logp) [+ flip] + log_det
# (all compute transposed: features on sublanes, batch on lanes)
# ----------------------------------------------------------------------------
_NT = (((1,), (1,)), ((), ()))   # contract last dims:  A @ B^T
_TN = (((0,), (0,)), ((), ()))   # contract first dims: A^T @ B


def maf_kernel(x_ref, w1t_ref, b1t_ref, w2t_ref, b2t_ref, wht_ref, bht_ref,
               tin_ref, tout_ref, u_ref, logdet_ref, *, dim):
    x = x_ref[...]                                    # (TB, D) f32
    xb = x.astype(jnp.bfloat16)

    # MADE: two masked-linear + ReLU layers, transposed (bf16 MXU, f32 acc).
    h1 = jnp.maximum(
        lax.dot_general(w1t_ref[...], xb, _NT,
                        preferred_element_type=jnp.float32)
        + b1t_ref[...], 0.0)                          # (H0, TB)
    h2 = jnp.maximum(
        jnp.dot(w2t_ref[...], h1.astype(jnp.bfloat16),
                preferred_element_type=jnp.float32)
        + b2t_ref[...], 0.0)                          # (H1, TB)

    # Fused output head: rows [0, D) = mu^T, rows [D, 2D) = (0.5*logp)^T.
    head = (jnp.dot(wht_ref[...], h2.astype(jnp.bfloat16),
                    preferred_element_type=jnp.float32)
            + bht_ref[...])                           # (2D, TB)
    mu_t = head[:dim, :]                              # (D, TB)
    lp_t = head[dim:, :]                              # (D, TB) == 0.5 * logp^T

    # Exact f32 transpose of x via MXU identity matmul: x^T = I @ x^T.
    x_t = lax.dot_general(tin_ref[...], x, _NT,
                          preferred_element_type=jnp.float32)   # (D, TB)

    # u^T = (x^T - mu^T) * exp(0.5*logp^T), lane-dense elementwise (f32 VPU).
    u_t = (x_t - mu_t) * jnp.exp(lp_t)                # (D, TB)

    # log_det = 0.5 * sum(logp) per batch column: sublane reduce -> (1, TB).
    logdet_ref[...] = jnp.sum(lp_t, axis=0, keepdims=True)

    # Transpose back to batch-major (reverse flip folded into t_out):
    # u[b, d] = sum_k u_t[k, b] * t_out[k, d].
    u_ref[...] = lax.dot_general(u_t, tout_ref[...], _TN,
                                 preferred_element_type=jnp.float32)  # (TB, D)


def _batch_tiling(batch):
    """Pick (TB, num_grid_steps).

    - batch <= 256: a single full-array tile (no raggedness, tiny problem).
    - otherwise: 128-multiple tiles (so the (1, TB) log_det block is legal and
      stores stay lane-aligned), capped at 2048, and never collapsing to a
      single grid step so megacore (v7x) can split the batch axis across both
      TensorCores.  At TB=2048 the double-buffered, lane-padded working set is
      ~5 MiB, far under the 32 MiB scoped-VMEM default on every generation.
    """
    if batch <= 256:
        return batch, 1
    tb = min(2048, _round_up(_cdiv(batch, 2), 128))
    return tb, _cdiv(batch, tb)


@jax.jit
def maf_forward(x, prepped):
    """MAFLayer.forward: returns (u, log_det) with u: (B, D), log_det: (B,)."""
    x = x.astype(jnp.float32)
    B, D = x.shape
    w1t, b1t = prepped["w1t"], prepped["b1t"]
    w2t, b2t = prepped["w2t"], prepped["b2t"]
    wht, bht = prepped["wht"], prepped["bht"]
    t_in, t_out = prepped["t_in"], prepped["t_out"]

    tb, grid_n = _batch_tiling(B)
    wconst = lambda i: (0, 0)   # weights / transpose matrices: fetched once

    u, logdet_row = pl.pallas_call(
        functools.partial(maf_kernel, dim=D),
        out_shape=(jax.ShapeDtypeStruct((B, D), jnp.float32),
                   jax.ShapeDtypeStruct((1, B), jnp.float32)),
        grid=(grid_n,),
        in_specs=[
            pl.BlockSpec((tb, D), lambda i: (i, 0)),   # x batch tile
            pl.BlockSpec(w1t.shape, wconst),           # w1^T (bf16)
            pl.BlockSpec(b1t.shape, wconst),           # b1^T
            pl.BlockSpec(w2t.shape, wconst),           # w2^T (bf16)
            pl.BlockSpec(b2t.shape, wconst),           # b2^T
            pl.BlockSpec(wht.shape, wconst),           # fused head W^T (bf16)
            pl.BlockSpec(bht.shape, wconst),           # fused head b^T
            pl.BlockSpec(t_in.shape, wconst),          # input transpose (I)
            pl.BlockSpec(t_out.shape, wconst),         # output transpose (+flip)
        ],
        out_specs=(
            pl.BlockSpec((tb, D), lambda i: (i, 0)),   # u batch tile
            pl.BlockSpec((1, tb), lambda i: (0, i)),   # log_det (lane-dense row)
        ),
        compiler_params=pltpu.CompilerParams(
            dimension_semantics=("parallel",)),
    )(x, w1t, b1t, w2t, b2t, wht, bht, t_in, t_out)

    return u, logdet_row[0]


# ----------------------------------------------------------------------------
# References
# ----------------------------------------------------------------------------
def maf_forward_ref(x, params, reverse):
    """Pure-f32 reference mirroring the PyTorch forward exactly."""
    x = x.astype(jnp.float32)
    h1 = jax.nn.relu(x @ params["w1"] + params["b1"])
    h2 = jax.nn.relu(h1 @ params["w2"] + params["b2"])
    mu = h2 @ params["w_mu"] + params["b_mu"]
    logp = h2 @ params["w_lp"] + params["b_lp"]
    u = (x - mu) * jnp.exp(0.5 * logp)
    if reverse:
        u = u[:, ::-1]
    return u, 0.5 * jnp.sum(logp, axis=1)


def maf_forward_matched_ref(x, params, reverse):
    """Reference with the same bf16 matmul casts as the kernel (tight check)."""
    x = x.astype(jnp.float32)
    xb = x.astype(jnp.bfloat16)
    w1b = params["w1"].astype(jnp.bfloat16)
    w2b = params["w2"].astype(jnp.bfloat16)
    wmub = params["w_mu"].astype(jnp.bfloat16)
    wlpb = (0.5 * params["w_lp"]).astype(jnp.bfloat16)
    h1 = jax.nn.relu(jnp.dot(xb, w1b, preferred_element_type=jnp.float32)
                     + params["b1"])
    h2 = jax.nn.relu(jnp.dot(h1.astype(jnp.bfloat16), w2b,
                             preferred_element_type=jnp.float32) + params["b2"])
    h2b = h2.astype(jnp.bfloat16)
    mu = jnp.dot(h2b, wmub, preferred_element_type=jnp.float32) + params["b_mu"]
    lph = (jnp.dot(h2b, wlpb, preferred_element_type=jnp.float32)
           + 0.5 * params["b_lp"])
    u = (x - mu) * jnp.exp(lph)
    if reverse:
        u = u[:, ::-1]
    return u, jnp.sum(lph, axis=1)


if __name__ == "__main__":
    DIM = 16
    HIDDEN_DIMS = [32, 32]

    key = jax.random.PRNGKey(0)
    k_param, k_x1, k_x2, k_x3 = jax.random.split(key, 4)
    params = init_maf_params(k_param, DIM, HIDDEN_DIMS)

    cases = (
        (200, True, k_x1),    # single full tile (TB == B), reverse path
        (8, False, k_x2),     # tiny batch, forward path
        (300, True, k_x3),    # 2-step grid with a ragged last tile
    )
    for B, reverse, kx in cases:
        prepped = prepare_maf_params(params, DIM, reverse)
        x = jax.random.normal(kx, (B, DIM), jnp.float32)

        u, log_det = maf_forward(x, prepped)
        jax.block_until_ready((u, log_det))

        # Tight check vs. a reference with identical bf16 matmul casts.
        u_m, ld_m = maf_forward_matched_ref(x, params, reverse)
        np.testing.assert_allclose(np.asarray(u), np.asarray(u_m),
                                   rtol=5e-4, atol=5e-4)
        np.testing.assert_allclose(np.asarray(log_det), np.asarray(ld_m),
                                   rtol=5e-4, atol=5e-4)

        # Loose sanity check vs. the pure-f32 module semantics (bf16 matmuls
        # are a deliberate perf approximation).
        u_r, ld_r = maf_forward_ref(x, params, reverse)
        np.testing.assert_allclose(np.asarray(u), np.asarray(u_r),
                                   rtol=1e-1, atol=1e-1)
        np.testing.assert_allclose(np.asarray(log_det), np.asarray(ld_r),
                                   rtol=1e-1, atol=1e-1)

    print("KERNEL_OK")
</pallas_src>

<mosaic_0001>
module attributes {stable_mosaic.version = 11 : i64} {
  func.func @maf_kernel(%arg0: i32, %arg1: memref<200x16xf32, #tpu.memory_space<vmem>>, %arg2: memref<32x16xbf16, #tpu.memory_space<vmem>>, %arg3: memref<32x1xf32, #tpu.memory_space<vmem>>, %arg4: memref<32x32xbf16, #tpu.memory_space<vmem>>, %arg5: memref<32x1xf32, #tpu.memory_space<vmem>>, %arg6: memref<32x32xbf16, #tpu.memory_space<vmem>>, %arg7: memref<32x1xf32, #tpu.memory_space<vmem>>, %arg8: memref<16x16xf32, #tpu.memory_space<vmem>>, %arg9: memref<16x16xf32, #tpu.memory_space<vmem>>, %arg10: memref<200x16xf32, #tpu.memory_space<vmem>>, %arg11: memref<1x200xf32, #tpu.memory_space<vmem>>) attributes {dimension_semantics = [#tpu.dimension_semantics<parallel>], iteration_bounds = array<i64: 1>, scalar_prefetch = 0 : i64, scratch_operands = 0 : i64, tpu.core_type = #tpu.core_type<tc>, window_params = [{transform_indices = @transform_0, window_bounds = array<i64: 200, 16>}, {pipeline_mode = #tpu.pipeline_mode<synchronous>, transform_indices = @transform_1, window_bounds = array<i64: 32, 16>}, {pipeline_mode = #tpu.pipeline_mode<synchronous>, transform_indices = @transform_2, window_bounds = array<i64: 32, 1>}, {pipeline_mode = #tpu.pipeline_mode<synchronous>, transform_indices = @transform_3, window_bounds = array<i64: 32, 32>}, {pipeline_mode = #tpu.pipeline_mode<synchronous>, transform_indices = @transform_4, window_bounds = array<i64: 32, 1>}, {pipeline_mode = #tpu.pipeline_mode<synchronous>, transform_indices = @transform_5, window_bounds = array<i64: 32, 32>}, {pipeline_mode = #tpu.pipeline_mode<synchronous>, transform_indices = @transform_6, window_bounds = array<i64: 32, 1>}, {pipeline_mode = #tpu.pipeline_mode<synchronous>, transform_indices = @transform_7, window_bounds = array<i64: 16, 16>}, {pipeline_mode = #tpu.pipeline_mode<synchronous>, transform_indices = @transform_8, window_bounds = array<i64: 16, 16>}, {transform_indices = @transform_9, window_bounds = array<i64: 200, 16>}, {transform_indices = @transform_10, window_bounds = array<i64: 1, 200>}]} {
    %c0 = arith.constant 0 : index
    %c0_0 = arith.constant 0 : index
    %0 = vector.load %arg1[%c0, %c0_0] : memref<200x16xf32, #tpu.memory_space<vmem>>, vector<200x16xf32>
    %1 = arith.truncf %0 : vector<200x16xf32> to vector<200x16xbf16>
    %c0_1 = arith.constant 0 : index
    %c0_2 = arith.constant 0 : index
    %2 = vector.load %arg2[%c0_1, %c0_2] : memref<32x16xbf16, #tpu.memory_space<vmem>>, vector<32x16xbf16>
    %cst = arith.constant dense<0.000000e+00> : vector<32x200xf32>
    %3 = tpu.matmul %2, %1, %cst {dimension_numbers = #tpu.dot_dimension_numbers<[1], [1], [0], [0], [0, 0, 1, 0], [], []>} : vector<32x16xbf16>, vector<200x16xbf16>, vector<32x200xf32> -> vector<32x200xf32>
    %c0_3 = arith.constant 0 : index
    %c0_4 = arith.constant 0 : index
    %4 = vector.load %arg3[%c0_3, %c0_4] : memref<32x1xf32, #tpu.memory_space<vmem>>, vector<32x1xf32>
    %5 = vector.broadcast %4 : vector<32x1xf32> to vector<32x200xf32>
    %6 = arith.addf %3, %5 : vector<32x200xf32>
    %cst_5 = arith.constant 0.000000e+00 : f32
    %7 = vector.broadcast %cst_5 : f32 to vector<32x200xf32>
    %8 = arith.maximumf %6, %7 : vector<32x200xf32>
    %c0_6 = arith.constant 0 : index
    %c0_7 = arith.constant 0 : index
    %9 = vector.load %arg4[%c0_6, %c0_7] : memref<32x32xbf16, #tpu.memory_space<vmem>>, vector<32x32xbf16>
    %10 = arith.truncf %8 : vector<32x200xf32> to vector<32x200xbf16>
    %cst_8 = arith.constant dense<0.000000e+00> : vector<32x200xf32>
    %11 = tpu.matmul %9, %10, %cst_8 {dimension_numbers = #tpu.dot_dimension_numbers<[1], [0], [0], [1], [0, 0, 1, 1], [], []>} : vector<32x32xbf16>, vector<32x200xbf16>, vector<32x200xf32> -> vector<32x200xf32>
    %c0_9 = arith.constant 0 : index
    %c0_10 = arith.constant 0 : index
    %12 = vector.load %arg5[%c0_9, %c0_10] : memref<32x1xf32, #tpu.memory_space<vmem>>, vector<32x1xf32>
    %13 = vector.broadcast %12 : vector<32x1xf32> to vector<32x200xf32>
    %14 = arith.addf %11, %13 : vector<32x200xf32>
    %cst_11 = arith.constant 0.000000e+00 : f32
    %15 = vector.broadcast %cst_11 : f32 to vector<32x200xf32>
    %16 = arith.maximumf %14, %15 : vector<32x200xf32>
    %c0_12 = arith.constant 0 : index
    %c0_13 = arith.constant 0 : index
    %17 = vector.load %arg6[%c0_12, %c0_13] : memref<32x32xbf16, #tpu.memory_space<vmem>>, vector<32x32xbf16>
    %18 = arith.truncf %16 : vector<32x200xf32> to vector<32x200xbf16>
    %cst_14 = arith.constant dense<0.000000e+00> : vector<32x200xf32>
    %19 = tpu.matmul %17, %18, %cst_14 {dimension_numbers = #tpu.dot_dimension_numbers<[1], [0], [0], [1], [0, 0, 1, 1], [], []>} : vector<32x32xbf16>, vector<32x200xbf16>, vector<32x200xf32> -> vector<32x200xf32>
    %c0_15 = arith.constant 0 : index
    %c0_16 = arith.constant 0 : index
    %20 = vector.load %arg7[%c0_15, %c0_16] : memref<32x1xf32, #tpu.memory_space<vmem>>, vector<32x1xf32>
    %21 = vector.broadcast %20 : vector<32x1xf32> to vector<32x200xf32>
    %22 = arith.addf %19, %21 : vector<32x200xf32>
    %23 = vector.extract_strided_slice %22 {offsets = [0, 0], sizes = [16, 200], strides = [1, 1]} : vector<32x200xf32> to vector<16x200xf32>
    %24 = vector.extract_strided_slice %22 {offsets = [16, 0], sizes = [16, 200], strides = [1, 1]} : vector<32x200xf32> to vector<16x200xf32>
    %c0_17 = arith.constant 0 : index
    %c0_18 = arith.constant 0 : index
    %25 = vector.load %arg8[%c0_17, %c0_18] : memref<16x16xf32, #tpu.memory_space<vmem>>, vector<16x16xf32>
    %cst_19 = arith.constant dense<0.000000e+00> : vector<16x200xf32>
    %26 = tpu.matmul %25, %0, %cst_19 {dimension_numbers = #tpu.dot_dimension_numbers<[1], [1], [0], [0], [0, 0, 1, 0], [], []>} : vector<16x16xf32>, vector<200x16xf32>, vector<16x200xf32> -> vector<16x200xf32>
    %27 = arith.subf %26, %23 : vector<16x200xf32>
    %28 = math.exp %24 : vector<16x200xf32>
    %29 = arith.mulf %27, %28 : vector<16x200xf32>
    %cst_20 = arith.constant dense<0.000000e+00> : vector<200xf32>
    %30 = vector.multi_reduction <add>, %24, %cst_20 [0] : vector<16x200xf32> to vector<200xf32>
    %31 = vector.shape_cast %30 : vector<200xf32> to vector<1x200xf32>
    %c0_21 = arith.constant 0 : index
    %c0_22 = arith.constant 0 : index
    %32 = vector.load %arg11[%c0_21, %c0_22] : memref<1x200xf32, #tpu.memory_space<vmem>>, vector<1x200xf32>
    tpu.vector_store %arg11[%c0_21, %c0_22], %31 {strides = array<i32>} : memref<1x200xf32, #tpu.memory_space<vmem>>, vector<1x200xf32>,
    %c0_23 = arith.constant 0 : index
    %c0_24 = arith.constant 0 : index
    %33 = vector.load %arg9[%c0_23, %c0_24] : memref<16x16xf32, #tpu.memory_space<vmem>>, vector<16x16xf32>
    %cst_25 = arith.constant dense<0.000000e+00> : vector<200x16xf32>
    %34 = tpu.matmul %29, %33, %cst_25 {dimension_numbers = #tpu.dot_dimension_numbers<[0], [0], [1], [1], [0, 1, 1, 1], [], []>} : vector<16x200xf32>, vector<16x16xf32>, vector<200x16xf32> -> vector<200x16xf32>
    %c0_26 = arith.constant 0 : index
    %c0_27 = arith.constant 0 : index
    %35 = vector.load %arg10[%c0_26, %c0_27] : memref<200x16xf32, #tpu.memory_space<vmem>>, vector<200x16xf32>
    tpu.vector_store %arg10[%c0_26, %c0_27], %34 {strides = array<i32>} : memref<200x16xf32, #tpu.memory_space<vmem>>, vector<200x16xf32>,
    return
  }
  func.func @transform_0(%arg0: i32) -> (i32, i32) {
    %c0_i32 = arith.constant 0 : i32
    %c0_i32_0 = arith.constant 0 : i32
    return %arg0, %c0_i32 : i32, i32
  }
  func.func @transform_1(%arg0: i32) -> (i32, i32) {
    %c0_i32 = arith.constant 0 : i32
    %c0_i32_0 = arith.constant 0 : i32
    %c0_i32_1 = arith.constant 0 : i32
    return %c0_i32, %c0_i32_0 : i32, i32
  }
  func.func @transform_2(%arg0: i32) -> (i32, i32) {
    %c0_i32 = arith.constant 0 : i32
    %c0_i32_0 = arith.constant 0 : i32
    %c0_i32_1 = arith.constant 0 : i32
    return %c0_i32, %c0_i32_0 : i32, i32
  }
  func.func @transform_3(%arg0: i32) -> (i32, i32) {
    %c0_i32 = arith.constant 0 : i32
    %c0_i32_0 = arith.constant 0 : i32
    %c0_i32_1 = arith.constant 0 : i32
    return %c0_i32, %c0_i32_0 : i32, i32
  }
  func.func @transform_4(%arg0: i32) -> (i32, i32) {
    %c0_i32 = arith.constant 0 : i32
    %c0_i32_0 = arith.constant 0 : i32
    %c0_i32_1 = arith.constant 0 : i32
    return %c0_i32, %c0_i32_0 : i32, i32
  }
  func.func @transform_5(%arg0: i32) -> (i32, i32) {
    %c0_i32 = arith.constant 0 : i32
    %c0_i32_0 = arith.constant 0 : i32
    %c0_i32_1 = arith.constant 0 : i32
    return %c0_i32, %c0_i32_0 : i32, i32
  }
  func.func @transform_6(%arg0: i32) -> (i32, i32) {
    %c0_i32 = arith.constant 0 : i32
    %c0_i32_0 = arith.constant 0 : i32
    %c0_i32_1 = arith.constant 0 : i32
    return %c0_i32, %c0_i32_0 : i32, i32
  }
  func.func @transform_7(%arg0: i32) -> (i32, i32) {
    %c0_i32 = arith.constant 0 : i32
    %c0_i32_0 = arith.constant 0 : i32
    %c0_i32_1 = arith.constant 0 : i32
    return %c0_i32, %c0_i32_0 : i32, i32
  }
  func.func @transform_8(%arg0: i32) -> (i32, i32) {
    %c0_i32 = arith.constant 0 : i32
    %c0_i32_0 = arith.constant 0 : i32
    %c0_i32_1 = arith.constant 0 : i32
    return %c0_i32, %c0_i32_0 : i32, i32
  }
  func.func @transform_9(%arg0: i32) -> (i32, i32) {
    %c0_i32 = arith.constant 0 : i32
    %c0_i32_0 = arith.constant 0 : i32
    return %arg0, %c0_i32 : i32, i32
  }
  func.func @transform_10(%arg0: i32) -> (i32, i32) {
    %c0_i32 = arith.constant 0 : i32
    %c0_i32_0 = arith.constant 0 : i32
    return %c0_i32, %arg0 : i32, i32
  }
}

</mosaic_0001>

<llo_original>
// kernel: maf_forward.1
$region0: #{maf_forward.1}
  #allocation0 [shape = 'u32[]', space=smem, size = 0x4, offset = 0x4, fixed_abs, tag = 'smem constant byte address 0x4 - core index']
  #allocation1 [shape = 'u32[144,128]{1,0:T(1,128)}', space=vmem, size = 0x12000, scoped, tag = 'internal scratch']
  %s0 = inlined_call_operand.vmem [shape: f32[200,16], index: 0, kind: input, shape index: {}]
  %s1 = inlined_call_operand.vmem [shape: bf16[32,16], index: 1, kind: input, shape index: {}]
  %s2 = inlined_call_operand.vmem [shape: f32[32,1], index: 2, kind: input, shape index: {}]
  %s3 = inlined_call_operand.vmem [shape: bf16[32,32], index: 3, kind: input, shape index: {}]
  %s4 = inlined_call_operand.vmem [shape: f32[32,1], index: 4, kind: input, shape index: {}]
  %s5 = inlined_call_operand.vmem [shape: bf16[32,32], index: 5, kind: input, shape index: {}]
  %s6 = inlined_call_operand.vmem [shape: f32[32,1], index: 6, kind: input, shape index: {}]
  %s7 = inlined_call_operand.vmem [shape: f32[16,16], index: 7, kind: input, shape index: {}]
  %s8 = inlined_call_operand.vmem [shape: f32[16,16], index: 8, kind: input, shape index: {}]
  %s9 = inlined_call_operand.vmem [shape: f32[200,16], index: 9, kind: output, shape index: {0}]
  %s10 = inlined_call_operand.hbm [shape: f32[1,200], index: 10, kind: output, shape index: {1}]
  %11 = xla_tuple %s9, %s10
  %s12 = sld [smem:[#allocation0]]
  $region54: #{maf_forward.1} parent=0
    _
  %s14 = ssub.s32 1, %s12
  %s15 = scalar_select 0, %s14, %s12
  $region1: #{maf_forward.1} parent=0
    #allocation2 [shape = 'u8[1024]{0}', space=vmem, size = 0x400, scoped, tag = 'output window, operand 1, single buffered']
    #allocation3 [shape = 's32[1]{0}', space=sflag, size = 0x4, scoped, tag = 'scoped memory for maf_forward.1']
    %16 = vsyncpa [#allocation3], 0
    // Predicated region
    $region2: #{maf_forward.1} parent=1 // pred_check
      _
    $region3: #{maf_forward.1} parent=1 // pred_check_branch
      %18 = sbr.rel (0) target = $region5
    $region4: #{maf_forward.1} parent=1 // pred_region
      _
    $region5: #{maf_forward.1} parent=1 // pred_fallthru
      _
    // Predicated region
    $region6: #{maf_forward.1} parent=1 // pred_check
      _
    $region7: #{maf_forward.1} parent=1 // pred_check_branch
      %20 = sbr.rel (0) target = $region9
    $region8: #{maf_forward.1} parent=1 // pred_region
      _
    $region9: #{maf_forward.1} parent=1 // pred_fallthru
      _
    // Predicated region
    $region10: #{maf_forward.1} parent=1 // pred_check
      _
    $region11: #{maf_forward.1} parent=1 // pred_check_branch
      %22 = sbr.rel (0) target = $region13
    $region12: #{maf_forward.1} parent=1 // pred_region
      _
    $region13: #{maf_forward.1} parent=1 // pred_fallthru
      _
    // Predicated region
    $region14: #{maf_forward.1} parent=1 // pred_check
      _
    $region15: #{maf_forward.1} parent=1 // pred_check_branch
      %24 = sbr.rel (0) target = $region17
    $region16: #{maf_forward.1} parent=1 // pred_region
      _
    $region17: #{maf_forward.1} parent=1 // pred_fallthru
      _
    // Predicated region
    $region18: #{maf_forward.1} parent=1 // pred_check
      _
    $region19: #{maf_forward.1} parent=1 // pred_check_branch
      %26 = sbr.rel (0) target = $region21
    $region20: #{maf_forward.1} parent=1 // pred_region
      _
    $region21: #{maf_forward.1} parent=1 // pred_fallthru
      _
    // Predicated region
    $region22: #{maf_forward.1} parent=1 // pred_check
      _
    $region23: #{maf_forward.1} parent=1 // pred_check_branch
      %28 = sbr.rel (0) target = $region25
    $region24: #{maf_forward.1} parent=1 // pred_region
      _
    $region25: #{maf_forward.1} parent=1 // pred_fallthru
      _
    // Predicated region
    $region26: #{maf_forward.1} parent=1 // pred_check
      _
    $region27: #{maf_forward.1} parent=1 // pred_check_branch
      %30 = sbr.rel (0) target = $region29
    $region28: #{maf_forward.1} parent=1 // pred_region
      _
    $region29: #{maf_forward.1} parent=1 // pred_fallthru
      _
    // Predicated region
    $region30: #{maf_forward.1} parent=1 // pred_check
      _
    $region31: #{maf_forward.1} parent=1 // pred_check_branch
      %32 = sbr.rel (0) target = $region33
    $region32: #{maf_forward.1} parent=1 // pred_region
      _
    $region33: #{maf_forward.1} parent=1 // pred_fallthru
      _
    // Predicated region
    $region34: #{maf_forward.1} parent=1 // pred_check
      _
    $region35: #{maf_forward.1} parent=1 // pred_check_branch
      %34 = sbr.rel (0) target = $region37
    $region36: #{maf_forward.1} parent=1 // pred_region
      _
    $region37: #{maf_forward.1} parent=1 // pred_fallthru
      _
    %v36 = vld [vmem:[%s0] sm:$0xff]
    %v37 = vld [vmem:[%s0 + $0x8] sm:$0xff]
    %v38 = vld [vmem:[%s0 + $0x10] sm:$0xff]
    %v39 = vld [vmem:[%s0 + $0x18] sm:$0xff]
    %v40 = vld [vmem:[%s0 + $0x20] sm:$0xff]
    %v41 = vld [vmem:[%s0 + $0x28] sm:$0xff]
    %v42 = vld [vmem:[%s0 + $0x30] sm:$0xff]
    %v43 = vld [vmem:[%s0 + $0x38] sm:$0xff]
    %v44 = vld [vmem:[%s0 + $0x40] sm:$0xff]
    %v45 = vld [vmem:[%s0 + $0x48] sm:$0xff]
    %v46 = vld [vmem:[%s0 + $0x50] sm:$0xff]
    %v47 = vld [vmem:[%s0 + $0x58] sm:$0xff]
    %v48 = vld [vmem:[%s0 + $0x60] sm:$0xff]
    %v49 = vld [vmem:[%s0 + $0x68] sm:$0xff]
    %v50 = vld [vmem:[%s0 + $0x70] sm:$0xff]
    %v51 = vld [vmem:[%s0 + $0x78] sm:$0xff]
    %v52 = vld [vmem:[%s0 + $0x80] sm:$0xff]
    %v53 = vld [vmem:[%s0 + $0x88] sm:$0xff]
    %v54 = vld [vmem:[%s0 + $0x90] sm:$0xff]
    %v55 = vld [vmem:[%s0 + $0x98] sm:$0xff]
    %v56 = vld [vmem:[%s0 + $0xa0] sm:$0xff]
    %v57 = vld [vmem:[%s0 + $0xa8] sm:$0xff]
    %v58 = vld [vmem:[%s0 + $0xb0] sm:$0xff]
    %v59 = vld [vmem:[%s0 + $0xb8] sm:$0xff]
    %v60 = vld [vmem:[%s0 + $0xc0] sm:$0xff]
    %v61 = vpack.c.bf16 %v37, %v36
    %v62 = vpack.c.bf16 %v39, %v38
    %v63 = vpack.c.bf16 %v41, %v40
    %v64 = vpack.c.bf16 %v43, %v42
    %v65 = vpack.c.bf16 %v45, %v44
    %v66 = vpack.c.bf16 %v47, %v46
    %v67 = vpack.c.bf16 %v49, %v48
    %v68 = vpack.c.bf16 %v51, %v50
    %v69 = vpack.c.bf16 %v53, %v52
    %v70 = vpack.c.bf16 %v55, %v54
    %v71 = vpack.c.bf16 %v57, %v56
    %v72 = vpack.c.bf16 %v59, %v58
    %v73 = vpack.c.bf16 %v60, %v60
    %v74 = vld [vmem:[%s1] sm:$0xf]
    %v75 = vld [vmem:[%s1 + $0x4] sm:$0xf]
    %v76 = vld [vmem:[%s1 + $0x8] sm:$0xf]
    %v77 = vld [vmem:[%s1 + $0xc] sm:$0xf]
    %v78 = vld [vmem:[%s2] sm:$0xff]
    %v79 = vld [vmem:[%s2 + $0x8] sm:$0xff]
    %v80 = vld [vmem:[%s2 + $0x10] sm:$0xff]
    %v81 = vld [vmem:[%s2 + $0x18] sm:$0xff]
    %83 = vset.pattern.permute.xlu0 0
    %84 = vperm.xlu0 %83, %v78
    %v85 = vpop.permute.xlu0 %84
    %88 = vset.pattern.permute.xlu0 0
    %89 = vperm.xlu0 %88, %v79
    %v90 = vpop.permute.xlu0 %89
    %93 = vset.pattern.permute.xlu0 0
    %94 = vperm.xlu0 %93, %v80
    %v95 = vpop.permute.xlu0 %94
    %98 = vset.pattern.permute.xlu0 0
    %99 = vperm.xlu0 %98, %v81
    %v100 = vpop.permute.xlu0 %99
    %v106 = vunpack.c.l.b16 %v74
    %v107 = vunpack.c.l.b16 %v75
    %v108 = vunpack.c.l.b16 %v76
    %v109 = vunpack.c.l.b16 %v77
    %v110 = vpack.c.b16 %v107, %v106
    %v111 = vpack.c.b16 %v109, %v108
    %vm112 = vcmask 130048
    %v114 = vsel %vm112, %v110, 0
    %v117 = vsel %vm112, %v111, 0
    %v120 = vsel %vm112, %v61, 0
    %v123 = vsel %vm112, %v62, 0
    %v126 = vsel %vm112, %v63, 0
    %v129 = vsel %vm112, %v64, 0
    %v132 = vsel %vm112, %v65, 0
    %v135 = vsel %vm112, %v66, 0
    %v138 = vsel %vm112, %v67, 0
    %v141 = vsel %vm112, %v68, 0
    %v144 = vsel %vm112, %v69, 0
    %v147 = vsel %vm112, %v70, 0
    %v150 = vsel %vm112, %v71, 0
    %v153 = vsel %vm112, %v72, 0
    %v156 = vsel %vm112, %v73, 0
    %158 = vmatprep.subr.bf16.mxu0 0
    %159 = vmatpush1.bf16.xpose.msra.mxu0 %v141
    %160 = vmatprep.subr.bf16.mxu0 0
    %161 = vmatpush1.bf16.xpose.msra.mxu0 %v138
    %162 = vmatprep.subr.bf16.mxu0 0
    %163 = vmatpush1.bf16.xpose.msra.mxu0 %v135
    %164 = vmatprep.subr.bf16.mxu0 0
    %165 = vmatpush1.bf16.xpose.msra.mxu0 %v132
    %166 = vmatprep.subr.bf16.mxu0 0
    %167 = vmatpush1.bf16.xpose.msra.mxu0 %v129
    %168 = vmatprep.subr.bf16.mxu0 0
    %169 = vmatpush1.bf16.xpose.msra.mxu0 %v126
    %170 = vmatprep.subr.bf16.mxu0 0
    %171 = vmatpush1.bf16.xpose.msra.mxu0 %v123
    %172 = vmatprep.subr.bf16.mxu0 0
    %173 = vmatpush1.bf16.xpose.msra.mxu0 %v120
    %174 = vmatprep.subr.bf16.mxu0 0
    %175 = vmatpush2.bf16.xpose.msra.mxu0 0
    %176 = vmatprep.subr.bf16.mxu0 0
    %177 = vmatpush2.bf16.xpose.msra.mxu0 0
    %178 = vmatprep.subr.bf16.mxu0 0
    %179 = vmatpush2.bf16.xpose.msra.mxu0 0
    %180 = vmatprep.subr.bf16.mxu0 0
    %181 = vmatpush2.bf16.xpose.msra.mxu0 %v156
    %182 = vmatprep.subr.bf16.mxu0 0
    %183 = vmatpush2.bf16.xpose.msra.mxu0 %v153
    %184 = vmatprep.subr.bf16.mxu0 0
    %185 = vmatpush2.bf16.xpose.msra.mxu0 %v150
    %186 = vmatprep.subr.bf16.mxu0 0
    %187 = vmatpush2.bf16.xpose.msra.mxu0 %v147
    %188 = vmatprep.subr.bf16.mxu0 0
    %189 = vmatpush2.bf16.xpose.msra.mxu0 %v144
    %190 = vmatprep.mubr.bf16.mxu0 0
    %191 = vmatmul.mubr.bf16.gmra.mxu0 %v114
    %v192 = vpop.f32.mrf.mxu0
    %v193 = vadd.f32 %v85, %v192
    %v194 = vpop.f32.mrf.mxu0
    %v195 = vadd.f32 %v85, %v194
    %v196 = vpop.f32.mrf.mxu0
    %v197 = vadd.f32 %v90, %v196
    %v198 = vpop.f32.mrf.mxu0
    %v199 = vadd.f32 %v90, %v198
    %200 = vmatprep.mubr.bf16.mxu0 0
    %201 = vmatmul.mubr.bf16.gmra.mxu0 %v117
    %v202 = vpop.f32.mrf.mxu0
    %v203 = vadd.f32 %v95, %v202
    %v204 = vpop.f32.mrf.mxu0
    %v205 = vadd.f32 %v95, %v204
    %v206 = vpop.f32.mrf.mxu0
    %v207 = vadd.f32 %v100, %v206
    %v208 = vpop.f32.mrf.mxu0
    %v209 = vadd.f32 %v100, %v208
    %210 = vdwg.mxu0
    %v211 = vmax.f32 %v193, 0.0
    %v212 = vmax.f32 %v195, 0.0
    %v213 = vmax.f32 %v197, 0.0
    %v214 = vmax.f32 %v199, 0.0
    %v215 = vmax.f32 %v203, 0.0
    %v216 = vmax.f32 %v205, 0.0
    %v217 = vmax.f32 %v207, 0.0
    %v218 = vmax.f32 %v209, 0.0
    %v219 = vld [vmem:[%s3] sm:$0xf]
    %v220 = vld [vmem:[%s3 + $0x4] sm:$0xf]
    %v221 = vld [vmem:[%s3 + $0x8] sm:$0xf]
    %v222 = vld [vmem:[%s3 + $0xc] sm:$0xf]
    %v223 = vpack.c.bf16 %v213, %v211
    %v224 = vpack.c.bf16 %v214, %v212
    %v225 = vpack.c.bf16 %v217, %v215
    %v226 = vpack.c.bf16 %v218, %v216
    %v227 = vld [vmem:[%s4] sm:$0xff]
    %v228 = vld [vmem:[%s4 + $0x8] sm:$0xff]
    %v229 = vld [vmem:[%s4 + $0x10] sm:$0xff]
    %v230 = vld [vmem:[%s4 + $0x18] sm:$0xff]
    %232 = vset.pattern.permute.xlu0 0
    %233 = vperm.xlu0 %232, %v227
    %v234 = vpop.permute.xlu0 %233
    %237 = vset.pattern.permute.xlu0 0
    %238 = vperm.xlu0 %237, %v228
    %v239 = vpop.permute.xlu0 %238
    %242 = vset.pattern.permute.xlu0 0
    %243 = vperm.xlu0 %242, %v229
    %v244 = vpop.permute.xlu0 %243
    %247 = vset.pattern.permute.xlu0 0
    %248 = vperm.xlu0 %247, %v230
    %v249 = vpop.permute.xlu0 %248
    %v255 = vunpack.c.l.b16 %v219
    %v256 = vunpack.c.l.b16 %v220
    %v257 = vunpack.c.l.b16 %v221
    %v258 = vunpack.c.l.b16 %v222
    %v259 = vpack.c.b16 %v256, %v255
    %v260 = vpack.c.b16 %v258, %v257
    %vm261 = vcmask 261120
    %v263 = vsel %vm261, %v259, 0
    %v266 = vsel %vm261, %v260, 0
    %268 = vmatprep.subr.bf16.mxu0 0
    %269 = vmatpush1.bf16.msra.mxu0 0
    %270 = vmatprep.subr.bf16.mxu0 0
    %271 = vmatpush1.bf16.msra.mxu0 0
    %272 = vmatprep.subr.bf16.mxu0 0
    %273 = vmatpush1.bf16.msra.mxu0 0
    %274 = vmatprep.subr.bf16.mxu0 0
    %275 = vmatpush1.bf16.msra.mxu0 0
    %276 = vmatprep.subr.bf16.mxu0 0
    %277 = vmatpush1.bf16.msra.mxu0 0
    %278 = vmatprep.subr.bf16.mxu0 0
    %279 = vmatpush1.bf16.msra.mxu0 0
    %280 = vmatprep.subr.bf16.mxu0 %v226
    %281 = vmatpush1.bf16.msra.mxu0 %v225
    %282 = vmatprep.subr.bf16.mxu0 %v224
    %283 = vmatpush1.bf16.msra.mxu0 %v223
    %284 = vmatprep.subr.bf16.mxu0 0
    %285 = vmatpush2.bf16.msra.mxu0 0
    %286 = vmatprep.subr.bf16.mxu0 0
    %287 = vmatpush2.bf16.msra.mxu0 0
    %288 = vmatprep.subr.bf16.mxu0 0
    %289 = vmatpush2.bf16.msra.mxu0 0
    %290 = vmatprep.subr.bf16.mxu0 0
    %291 = vmatpush2.bf16.msra.mxu0 0
    %292 = vmatprep.subr.bf16.mxu0 0
    %293 = vmatpush2.bf16.msra.mxu0 0
    %294 = vmatprep.subr.bf16.mxu0 0
    %295 = vmatpush2.bf16.msra.mxu0 0
    %296 = vmatprep.subr.bf16.mxu0 0
    %297 = vmatpush2.bf16.msra.mxu0 0
    %298 = vmatprep.subr.bf16.mxu0 0
    %299 = vmatpush2.bf16.msra.mxu0 0
    %300 = vmatprep.mubr.bf16.mxu0 0
    %301 = vmatmul.mubr.bf16.gmra.mxu0 %v263
    %v302 = vpop.f32.mrf.mxu0
    %v303 = vadd.f32 %v234, %v302
    %v304 = vpop.f32.mrf.mxu0
    %v305 = vadd.f32 %v234, %v304
    %v306 = vpop.f32.mrf.mxu0
    %v307 = vadd.f32 %v239, %v306
    %v308 = vpop.f32.mrf.mxu0
    %v309 = vadd.f32 %v239, %v308
    %310 = vmatprep.mubr.bf16.mxu0 0
    %311 = vmatmul.mubr.bf16.gmra.mxu0 %v266
    %v312 = vpop.f32.mrf.mxu0
    %v313 = vadd.f32 %v244, %v312
    %v314 = vpop.f32.mrf.mxu0
    %v315 = vadd.f32 %v244, %v314
    %v316 = vpop.f32.mrf.mxu0
    %v317 = vadd.f32 %v249, %v316
    %v318 = vpop.f32.mrf.mxu0
    %v319 = vadd.f32 %v249, %v318
    %320 = vdwg.mxu0
    %v321 = vmax.f32 %v303, 0.0
    %v322 = vmax.f32 %v305, 0.0
    %v323 = vmax.f32 %v307, 0.0
    %v324 = vmax.f32 %v309, 0.0
    %v325 = vmax.f32 %v313, 0.0
    %v326 = vmax.f32 %v315, 0.0
    %v327 = vmax.f32 %v317, 0.0
    %v328 = vmax.f32 %v319, 0.0
    %v329 = vld [vmem:[%s5] sm:$0xf]
    %v330 = vld [vmem:[%s5 + $0x4] sm:$0xf]
    %v331 = vld [vmem:[%s5 + $0x8] sm:$0xf]
    %v332 = vld [vmem:[%s5 + $0xc] sm:$0xf]
    %v333 = vpack.c.bf16 %v323, %v321
    %v334 = vpack.c.bf16 %v324, %v322
    %v335 = vpack.c.bf16 %v327, %v325
    %v336 = vpack.c.bf16 %v328, %v326
    %v337 = vld [vmem:[%s6] sm:$0xff]
    %v338 = vld [vmem:[%s6 + $0x8] sm:$0xff]
    %v339 = vld [vmem:[%s6 + $0x10] sm:$0xff]
    %v340 = vld [vmem:[%s6 + $0x18] sm:$0xff]
    %342 = vset.pattern.permute.xlu0 0
    %343 = vperm.xlu0 %342, %v337
    %v344 = vpop.permute.xlu0 %343
    %347 = vset.pattern.permute.xlu0 0
    %348 = vperm.xlu0 %347, %v338
    %v349 = vpop.permute.xlu0 %348
    %352 = vset.pattern.permute.xlu0 0
    %353 = vperm.xlu0 %352, %v339
    %v354 = vpop.permute.xlu0 %353
    %357 = vset.pattern.permute.xlu0 0
    %358 = vperm.xlu0 %357, %v340
    %v359 = vpop.permute.xlu0 %358
    %v365 = vunpack.c.l.b16 %v329
    %v366 = vunpack.c.l.b16 %v330
    %v367 = vunpack.c.l.b16 %v331
    %v368 = vunpack.c.l.b16 %v332
    %v369 = vpack.c.b16 %v366, %v365
    %v370 = vpack.c.b16 %v368, %v367
    %v372 = vsel %vm261, %v369, 0
    %v375 = vsel %vm261, %v370, 0
    %377 = vmatprep.subr.bf16.mxu0 0
    %378 = vmatpush1.bf16.msra.mxu0 0
    %379 = vmatprep.subr.bf16.mxu0 0
    %380 = vmatpush1.bf16.msra.mxu0 0
    %381 = vmatprep.subr.bf16.mxu0 0
    %382 = vmatpush1.bf16.msra.mxu0 0
    %383 = vmatprep.subr.bf16.mxu0 0
    %384 = vmatpush1.bf16.msra.mxu0 0
    %385 = vmatprep.subr.bf16.mxu0 0
    %386 = vmatpush1.bf16.msra.mxu0 0
    %387 = vmatprep.subr.bf16.mxu0 0
    %388 = vmatpush1.bf16.msra.mxu0 0
    %389 = vmatprep.subr.bf16.mxu0 %v336
    %390 = vmatpush1.bf16.msra.mxu0 %v335
    %391 = vmatprep.subr.bf16.mxu0 %v334
    %392 = vmatpush1.bf16.msra.mxu0 %v333
    %393 = vmatprep.subr.bf16.mxu0 0
    %394 = vmatpush2.bf16.msra.mxu0 0
    %395 = vmatprep.subr.bf16.mxu0 0
    %396 = vmatpush2.bf16.msra.mxu0 0
    %397 = vmatprep.subr.bf16.mxu0 0
    %398 = vmatpush2.bf16.msra.mxu0 0
    %399 = vmatprep.subr.bf16.mxu0 0
    %400 = vmatpush2.bf16.msra.mxu0 0
    %401 = vmatprep.subr.bf16.mxu0 0
    %402 = vmatpush2.bf16.msra.mxu0 0
    %403 = vmatprep.subr.bf16.mxu0 0
    %404 = vmatpush2.bf16.msra.mxu0 0
    %405 = vmatprep.subr.bf16.mxu0 0
    %406 = vmatpush2.bf16.msra.mxu0 0
    %407 = vmatprep.subr.bf16.mxu0 0
    %408 = vmatpush2.bf16.msra.mxu0 0
    %409 = vmatprep.mubr.bf16.mxu0 0
    %410 = vmatmul.mubr.bf16.gmra.mxu0 %v372
    %v411 = vpop.f32.mrf.mxu0
    %v412 = vadd.f32 %v344, %v411
    %v413 = vpop.f32.mrf.mxu0
    %v414 = vadd.f32 %v344, %v413
    %v415 = vpop.f32.mrf.mxu0
    %v416 = vadd.f32 %v349, %v415
    %v417 = vpop.f32.mrf.mxu0
    %v418 = vadd.f32 %v349, %v417
    %419 = vmatprep.mubr.bf16.mxu0 0
    %420 = vmatmul.mubr.bf16.gmra.mxu0 %v375
    %v421 = vpop.f32.mrf.mxu0
    %v422 = vadd.f32 %v354, %v421
    %v423 = vpop.f32.mrf.mxu0
    %v424 = vadd.f32 %v354, %v423
    %v425 = vpop.f32.mrf.mxu0
    %v426 = vadd.f32 %v359, %v425
    %v427 = vpop.f32.mrf.mxu0
    %v428 = vadd.f32 %v359, %v427
    %429 = vdwg.mxu0
    %v430 = vld [vmem:[%s7] sm:$0xff]
    %v431 = vld [vmem:[%s7 + $0x8] sm:$0xff]
    %v433 = vsel %vm112, %v430, 0
    %v436 = vsel %vm112, %v431, 0
    %v439 = vsel %vm112, %v36, 0
    %v442 = vsel %vm112, %v37, 0
    %v445 = vsel %vm112, %v38, 0
    %v448 = vsel %vm112, %v39, 0
    %v451 = vsel %vm112, %v40, 0
    %v454 = vsel %vm112, %v41, 0
    %v457 = vsel %vm112, %v42, 0
    %v460 = vsel %vm112, %v43, 0
    %v463 = vsel %vm112, %v44, 0
    %v466 = vsel %vm112, %v45, 0
    %v469 = vsel %vm112, %v46, 0
    %v472 = vsel %vm112, %v47, 0
    %v475 = vsel %vm112, %v48, 0
    %v478 = vsel %vm112, %v49, 0
    %v481 = vsel %vm112, %v50, 0
    %v484 = vsel %vm112, %v51, 0
    %v487 = vsel %vm112, %v52, 0
    %v490 = vsel %vm112, %v53, 0
    %v493 = vsel %vm112, %v54, 0
    %v496 = vsel %vm112, %v55, 0
    %v499 = vsel %vm112, %v56, 0
    %v502 = vsel %vm112, %v57, 0
    %v505 = vsel %vm112, %v58, 0
    %v508 = vsel %vm112, %v59, 0
    %v511 = vsel %vm112, %v60, 0
    %513 = vmatprep.subr.mxu0 0.0
    %514 = vmatpush1.xpose.msra.mxu0 %v484
    %515 = vmatprep.subr.mxu0 0.0
    %516 = vmatpush1.xpose.msra.mxu0 %v481
    %517 = vmatprep.subr.mxu0 0.0
    %518 = vmatpush1.xpose.msra.mxu0 %v478
    %519 = vmatprep.subr.mxu0 0.0
    %520 = vmatpush1.xpose.msra.mxu0 %v475
    %521 = vmatprep.subr.mxu0 0.0
    %522 = vmatpush1.xpose.msra.mxu0 %v472
    %523 = vmatprep.subr.mxu0 0.0
    %524 = vmatpush1.xpose.msra.mxu0 %v469
    %525 = vmatprep.subr.mxu0 0.0
    %526 = vmatpush1.xpose.msra.mxu0 %v466
    %527 = vmatprep.subr.mxu0 0.0
    %528 = vmatpush1.xpose.msra.mxu0 %v463
    %529 = vmatprep.subr.mxu0 0.0
    %530 = vmatpush1.xpose.msra.mxu0 %v460
    %531 = vmatprep.subr.mxu0 0.0
    %532 = vmatpush1.xpose.msra.mxu0 %v457
    %533 = vmatprep.subr.mxu0 0.0
    %534 = vmatpush1.xpose.msra.mxu0 %v454
    %535 = vmatprep.subr.mxu0 0.0
    %536 = vmatpush1.xpose.msra.mxu0 %v451
    %537 = vmatprep.subr.mxu0 0.0
    %538 = vmatpush1.xpose.msra.mxu0 %v448
    %539 = vmatprep.subr.mxu0 0.0
    %540 = vmatpush1.xpose.msra.mxu0 %v445
    %541 = vmatprep.subr.mxu0 0.0
    %542 = vmatpush1.xpose.msra.mxu0 %v442
    %543 = vmatprep.subr.mxu0 0.0
    %544 = vmatpush1.xpose.msra.mxu0 %v439
    %545 = vmatprep.subr.mxu0 0.0
    %546 = vmatpush2.xpose.msra.mxu0 0.0
    %547 = vmatprep.subr.mxu0 0.0
    %548 = vmatpush2.xpose.msra.mxu0 0.0
    %549 = vmatprep.subr.mxu0 0.0
    %550 = vmatpush2.xpose.msra.mxu0 0.0
    %551 = vmatprep.subr.mxu0 0.0
    %552 = vmatpush2.xpose.msra.mxu0 0.0
    %553 = vmatprep.subr.mxu0 0.0
    %554 = vmatpush2.xpose.msra.mxu0 0.0
    %555 = vmatprep.subr.mxu0 0.0
    %556 = vmatpush2.xpose.msra.mxu0 0.0
    %557 = vmatprep.subr.mxu0 0.0
    %558 = vmatpush2.xpose.msra.mxu0 0.0
    %559 = vmatprep.subr.mxu0 0.0
    %560 = vmatpush2.xpose.msra.mxu0 %v511
    %561 = vmatprep.subr.mxu0 0.0
    %562 = vmatpush2.xpose.msra.mxu0 %v508
    %563 = vmatprep.subr.mxu0 0.0
    %564 = vmatpush2.xpose.msra.mxu0 %v505
    %565 = vmatprep.subr.mxu0 0.0
    %566 = vmatpush2.xpose.msra.mxu0 %v502
    %567 = vmatprep.subr.mxu0 0.0
    %568 = vmatpush2.xpose.msra.mxu0 %v499
    %569 = vmatprep.subr.mxu0 0.0
    %570 = vmatpush2.xpose.msra.mxu0 %v496
    %571 = vmatprep.subr.mxu0 0.0
    %572 = vmatpush2.xpose.msra.mxu0 %v493
    %573 = vmatprep.subr.mxu0 0.0
    %574 = vmatpush2.xpose.msra.mxu0 %v490
    %575 = vmatprep.subr.mxu0 0.0
    %576 = vmatpush2.xpose.msra.mxu0 %v487
    %577 = vmatprep.mubr.f32.mxu0 0.0
    %578 = vmatmul.mubr.f32.gmra.mxu0 %v433
    %v579 = vpop.f32.mrf.mxu0
    %v580 = vadd.f32 0.0, %v579
    %v581 = vpop.f32.mrf.mxu0
    %v582 = vadd.f32 0.0, %v581
    %583 = vmatprep.mubr.f32.mxu0 0.0
    %584 = vmatmul.mubr.f32.gmra.mxu0 %v436
    %v585 = vpop.f32.mrf.mxu0
    %v586 = vadd.f32 0.0, %v585
    %v587 = vpop.f32.mrf.mxu0
    %v588 = vadd.f32 0.0, %v587
    %589 = vdwg.mxu0
    %v590 = vsub.f32 %v580, %v412
    %v591 = vsub.f32 %v582, %v414
    %v592 = vsub.f32 %v586, %v416
    %v593 = vsub.f32 %v588, %v418
    %v594 = vmul.f32 %v422, 1.442695
    %v595 = vpow.pop %v594
    %v596 = vmul.f32 %v424, 1.442695
    %v597 = vpow.pop %v596
    %v598 = vmul.f32 %v426, 1.442695
    %v599 = vpow.pop %v598
    %v600 = vmul.f32 %v428, 1.442695
    %v601 = vpow.pop %v600
    %v602 = vmul.f32 %v590, %v595
    %v603 = vmul.f32 %v591, %v597
    %v604 = vmul.f32 %v592, %v599
    %v605 = vmul.f32 %v593, %v601
    %v606 = vadd.f32 %v422, %v426
    %v607 = vrot.slane %v606, 4
    %v608 = vadd.f32 %v606, %v607
    %v609 = vrot.slane %v608, 2
    %v610 = vadd.f32 %v608, %v609
    %v611 = vrot.slane %v610, 1
    %v612 = vadd.f32 %v610, %v611
    %vm613 = vcmask 588800
    %v614 = vsel %vm613, %v424, 0.0
    %v615 = vsel %vm613, %v428, 0.0
    %v616 = vadd.f32 %v614, %v615
    %v617 = vrot.slane %v616, 4
    %v618 = vadd.f32 %v616, %v617
    %v619 = vrot.slane %v618, 2
    %v620 = vadd.f32 %v618, %v619
    %v621 = vrot.slane %v620, 1
    %v622 = vadd.f32 %v620, %v621
    %v625 = vcombine.low %v612, %v622
    %v627 = vunpack.c.l.s4 1966171168
    %v628 = vunpack.c.0.s8 %v627
    %v629 = vlaneseq
    %v630 = vshrl.u32 %v629, 7
    %v631 = vsub.s32 %v628, %v630
    %v632 = vrot.slane %v625, %v631
    %v634 = vunpack.c.l.s4 1966171168
    %v635 = vunpack.c.0.s8 %v634
    %v636 = vlaneseq
    %v637 = vshrl.u32 %v636, 7
    %v638 = vsub.s32 %v635, %v637
    %v639 = vrot.slane %v632, %v638
    %v641 = vlaneseq
    %vm642 = vcmp.ge.s32.totalorder %v641, 0
    %vm643 = vcmp.lt.s32.totalorder %v641, 200
    %vm644 = vmand %vm642, %vm643
    %645 = vst.msk [vmem:[#allocation2] sm:$0x3] %vm644, %v639
    %v646 = vld [vmem:[%s8] sm:$0xff]
    %v647 = vld [vmem:[%s8 + $0x8] sm:$0xff]
    %648 = vxpose.xlu0.b32.start [1/16] %v602, 128
    %649 = vxpose.xlu0.b32.cont [2/16] %v604, 128
    %650 = vxpose.xlu0.b32.cont [3/16] 0.0, 128
    %651 = vxpose.xlu0.b32.cont [4/16] 0.0, 128
    %652 = vxpose.xlu0.b32.cont [5/16] 0.0, 128
    %653 = vxpose.xlu0.b32.cont [6/16] 0.0, 128
    %654 = vxpose.xlu0.b32.cont [7/16] 0.0, 128
    %655 = vxpose.xlu0.b32.cont [8/16] 0.0, 128
    %656 = vxpose.xlu0.b32.cont [9/16] 0.0, 128
    %657 = vxpose.xlu0.b32.cont [10/16] 0.0, 128
    %658 = vxpose.xlu0.b32.cont [11/16] 0.0, 128
    %659 = vxpose.xlu0.b32.cont [12/16] 0.0, 128
    %660 = vxpose.xlu0.b32.cont [13/16] 0.0, 128
    %661 = vxpose.xlu0.b32.cont [14/16] 0.0, 128
    %662 = vxpose.xlu0.b32.cont [15/16] 0.0, 128
    %663 = vxpose.xlu0.b32.end [16/16] 0.0, 128
    %v664 = vpop.trf.xlu0
    %v665 = vpop.trf.xlu0
    %v666 = vpop.trf.xlu0
    %v667 = vpop.trf.xlu0
    %v668 = vpop.trf.xlu0
    %v669 = vpop.trf.xlu0
    %v670 = vpop.trf.xlu0
    %v671 = vpop.trf.xlu0
    %v672 = vpop.trf.xlu0
    %v673 = vpop.trf.xlu0
    %v674 = vpop.trf.xlu0
    %v675 = vpop.trf.xlu0
    %v676 = vpop.trf.xlu0
    %v677 = vpop.trf.xlu0
    %v678 = vpop.trf.xlu0
    %v679 = vpop.trf.xlu0
    %680 = vxpose.xlu0.b32.start [1/16] %v603, 128
    %681 = vxpose.xlu0.b32.cont [2/16] %v605, 128
    %682 = vxpose.xlu0.b32.cont [3/16] 0.0, 128
    %683 = vxpose.xlu0.b32.cont [4/16] 0.0, 128
    %684 = vxpose.xlu0.b32.cont [5/16] 0.0, 128
    %685 = vxpose.xlu0.b32.cont [6/16] 0.0, 128
    %686 = vxpose.xlu0.b32.cont [7/16] 0.0, 128
    %687 = vxpose.xlu0.b32.cont [8/16] 0.0, 128
    %688 = vxpose.xlu0.b32.cont [9/16] 0.0, 128
    %689 = vxpose.xlu0.b32.cont [10/16] 0.0, 128
    %690 = vxpose.xlu0.b32.cont [11/16] 0.0, 128
    %691 = vxpose.xlu0.b32.cont [12/16] 0.0, 128
    %692 = vxpose.xlu0.b32.cont [13/16] 0.0, 128
    %693 = vxpose.xlu0.b32.cont [14/16] 0.0, 128
    %694 = vxpose.xlu0.b32.cont [15/16] 0.0, 128
    %695 = vxpose.xlu0.b32.end [16/16] 0.0, 128
    %v696 = vpop.trf.xlu0
    %v697 = vpop.trf.xlu0
    %v698 = vpop.trf.xlu0
    %v699 = vpop.trf.xlu0
    %v700 = vpop.trf.xlu0
    %v701 = vpop.trf.xlu0
    %v702 = vpop.trf.xlu0
    %v703 = vpop.trf.xlu0
    %v704 = vpop.trf.xlu0
    %v705 = vpop.trf.xlu0
    %v706 = vpop.trf.xlu0
    %v707 = vpop.trf.xlu0
    %v708 = vpop.trf.xlu0
    %v709 = vpop.trf.xlu0
    %v710 = vpop.trf.xlu0
    %v711 = vpop.trf.xlu0
    %v713 = vsel %vm112, %v664, 0
    %v716 = vsel %vm112, %v665, 0
    %v719 = vsel %vm112, %v666, 0
    %v722 = vsel %vm112, %v667, 0
    %v725 = vsel %vm112, %v668, 0
    %v728 = vsel %vm112, %v669, 0
    %v731 = vsel %vm112, %v670, 0
    %v734 = vsel %vm112, %v671, 0
    %v737 = vsel %vm112, %v672, 0
    %v740 = vsel %vm112, %v673, 0
    %v743 = vsel %vm112, %v674, 0
    %v746 = vsel %vm112, %v675, 0
    %v749 = vsel %vm112, %v676, 0
    %v752 = vsel %vm112, %v677, 0
    %v755 = vsel %vm112, %v678, 0
    %v758 = vsel %vm112, %v679, 0
    %v761 = vsel %vm112, %v696, 0
    %v764 = vsel %vm112, %v697, 0
    %v767 = vsel %vm112, %v698, 0
    %v770 = vsel %vm112, %v699, 0
    %v773 = vsel %vm112, %v700, 0
    %v776 = vsel %vm112, %v701, 0
    %v779 = vsel %vm112, %v702, 0
    %v782 = vsel %vm112, %v703, 0
    %v785 = vsel %vm112, %v704, 0
    %787 = vmatprep.subr.mxu0 0.0
    %788 = vmatpush1.msra.mxu0 0.0
    %789 = vmatprep.subr.mxu0 0.0
    %790 = vmatpush1.msra.mxu0 0.0
    %791 = vmatprep.subr.mxu0 0.0
    %792 = vmatpush1.msra.mxu0 0.0
    %793 = vmatprep.subr.mxu0 0.0
    %794 = vmatpush1.msra.mxu0 0.0
    %795 = vmatprep.subr.mxu0 0.0
    %796 = vmatpush1.msra.mxu0 0.0
    %797 = vmatprep.subr.mxu0 0.0
    %798 = vmatpush1.msra.mxu0 0.0
    %799 = vmatprep.subr.mxu0 0.0
    %800 = vmatpush1.msra.mxu0 0.0
    %801 = vmatprep.subr.mxu0 0.0
    %802 = vmatpush1.msra.mxu0 0.0
    %803 = vmatprep.subr.mxu0 0.0
    %804 = vmatpush1.msra.mxu0 0.0
    %805 = vmatprep.subr.mxu0 0.0
    %806 = vmatpush1.msra.mxu0 0.0
    %807 = vmatprep.subr.mxu0 0.0
    %808 = vmatpush1.msra.mxu0 0.0
    %809 = vmatprep.subr.mxu0 0.0
    %810 = vmatpush1.msra.mxu0 0.0
    %811 = vmatprep.subr.mxu0 0.0
    %812 = vmatpush1.msra.mxu0 0.0
    %813 = vmatprep.subr.mxu0 0.0
    %814 = vmatpush1.msra.mxu0 0.0
    %815 = vmatprep.subr.mxu0 0.0
    %816 = vmatpush1.msra.mxu0 %v647
    %817 = vmatprep.subr.mxu0 0.0
    %818 = vmatpush1.msra.mxu0 %v646
    %819 = vmatprep.subr.mxu0 0.0
    %820 = vmatpush2.msra.mxu0 0.0
    %821 = vmatprep.subr.mxu0 0.0
    %822 = vmatpush2.msra.mxu0 0.0
    %823 = vmatprep.subr.mxu0 0.0
    %824 = vmatpush2.msra.mxu0 0.0
    %825 = vmatprep.subr.mxu0 0.0
    %826 = vmatpush2.msra.mxu0 0.0
    %827 = vmatprep.subr.mxu0 0.0
    %828 = vmatpush2.msra.mxu0 0.0
    %829 = vmatprep.subr.mxu0 0.0
    %830 = vmatpush2.msra.mxu0 0.0
    %831 = vmatprep.subr.mxu0 0.0
    %832 = vmatpush2.msra.mxu0 0.0
    %833 = vmatprep.subr.mxu0 0.0
    %834 = vmatpush2.msra.mxu0 0.0
    %835 = vmatprep.subr.mxu0 0.0
    %836 = vmatpush2.msra.mxu0 0.0
    %837 = vmatprep.subr.mxu0 0.0
    %838 = vmatpush2.msra.mxu0 0.0
    %839 = vmatprep.subr.mxu0 0.0
    %840 = vmatpush2.msra.mxu0 0.0
    %841 = vmatprep.subr.mxu0 0.0
    %842 = vmatpush2.msra.mxu0 0.0
    %843 = vmatprep.subr.mxu0 0.0
    %844 = vmatpush2.msra.mxu0 0.0
    %845 = vmatprep.subr.mxu0 0.0
    %846 = vmatpush2.msra.mxu0 0.0
    %847 = vmatprep.subr.mxu0 0.0
    %848 = vmatpush2.msra.mxu0 0.0
    %849 = vmatprep.subr.mxu0 0.0
    %850 = vmatpush2.msra.mxu0 0.0
    %851 = vmatprep.mubr.f32.mxu0 0.0
    %852 = vmatmul.mubr.f32.gmra.mxu0 %v713
    %v853 = vpop.f32.mrf.mxu0
    %v854 = vadd.f32 0.0, %v853
    %v855 = vpop.f32.mrf.mxu0
    %856 = vmatprep.mubr.f32.mxu0 0.0
    %857 = vmatmul.mubr.f32.gmra.mxu0 %v716
    %v858 = vpop.f32.mrf.mxu0
    %v859 = vadd.f32 0.0, %v858
    %v860 = vpop.f32.mrf.mxu0
    %861 = vmatprep.mubr.f32.mxu0 0.0
    %862 = vmatmul.mubr.f32.gmra.mxu0 %v719
    %v863 = vpop.f32.mrf.mxu0
    %v864 = vadd.f32 0.0, %v863
    %v865 = vpop.f32.mrf.mxu0
    %866 = vmatprep.mubr.f32.mxu0 0.0
    %867 = vmatmul.mubr.f32.gmra.mxu0 %v722
    %v868 = vpop.f32.mrf.mxu0
    %v869 = vadd.f32 0.0, %v868
    %v870 = vpop.f32.mrf.mxu0
    %871 = vmatprep.mubr.f32.mxu0 0.0
    %872 = vmatmul.mubr.f32.gmra.mxu0 %v725
    %v873 = vpop.f32.mrf.mxu0
    %v874 = vadd.f32 0.0, %v873
    %v875 = vpop.f32.mrf.mxu0
    %876 = vmatprep.mubr.f32.mxu0 0.0
    %877 = vmatmul.mubr.f32.gmra.mxu0 %v728
    %v878 = vpop.f32.mrf.mxu0
    %v879 = vadd.f32 0.0, %v878
    %v880 = vpop.f32.mrf.mxu0
    %881 = vmatprep.mubr.f32.mxu0 0.0
    %882 = vmatmul.mubr.f32.gmra.mxu0 %v731
    %v883 = vpop.f32.mrf.mxu0
    %v884 = vadd.f32 0.0, %v883
    %v885 = vpop.f32.mrf.mxu0
    %886 = vmatprep.mubr.f32.mxu0 0.0
    %887 = vmatmul.mubr.f32.gmra.mxu0 %v734
    %v888 = vpop.f32.mrf.mxu0
    %v889 = vadd.f32 0.0, %v888
    %v890 = vpop.f32.mrf.mxu0
    %891 = vmatprep.mubr.f32.mxu0 0.0
    %892 = vmatmul.mubr.f32.gmra.mxu0 %v737
    %v893 = vpop.f32.mrf.mxu0
    %v894 = vadd.f32 0.0, %v893
    %v895 = vpop.f32.mrf.mxu0
    %896 = vmatprep.mubr.f32.mxu0 0.0
    %897 = vmatmul.mubr.f32.gmra.mxu0 %v740
    %v898 = vpop.f32.mrf.mxu0
    %v899 = vadd.f32 0.0, %v898
    %v900 = vpop.f32.mrf.mxu0
    %901 = vmatprep.mubr.f32.mxu0 0.0
    %902 = vmatmul.mubr.f32.gmra.mxu0 %v743
    %v903 = vpop.f32.mrf.mxu0
    %v904 = vadd.f32 0.0, %v903
    %v905 = vpop.f32.mrf.mxu0
    %906 = vmatprep.mubr.f32.mxu0 0.0
    %907 = vmatmul.mubr.f32.gmra.mxu0 %v746
    %v908 = vpop.f32.mrf.mxu0
    %v909 = vadd.f32 0.0, %v908
    %v910 = vpop.f32.mrf.mxu0
    %911 = vmatprep.mubr.f32.mxu0 0.0
    %912 = vmatmul.mubr.f32.gmra.mxu0 %v749
    %v913 = vpop.f32.mrf.mxu0
    %v914 = vadd.f32 0.0, %v913
    %v915 = vpop.f32.mrf.mxu0
    %916 = vmatprep.mubr.f32.mxu0 0.0
    %917 = vmatmul.mubr.f32.gmra.mxu0 %v752
    %v918 = vpop.f32.mrf.mxu0
    %v919 = vadd.f32 0.0, %v918
    %v920 = vpop.f32.mrf.mxu0
    %921 = vmatprep.mubr.f32.mxu0 0.0
    %922 = vmatmul.mubr.f32.gmra.mxu0 %v755
    %v923 = vpop.f32.mrf.mxu0
    %v924 = vadd.f32 0.0, %v923
    %v925 = vpop.f32.mrf.mxu0
    %926 = vmatprep.mubr.f32.mxu0 0.0
    %927 = vmatmul.mubr.f32.gmra.mxu0 %v758
    %v928 = vpop.f32.mrf.mxu0
    %v929 = vadd.f32 0.0, %v928
    %v930 = vpop.f32.mrf.mxu0
    %931 = vmatprep.mubr.f32.mxu0 0.0
    %932 = vmatmul.mubr.f32.gmra.mxu0 %v761
    %v933 = vpop.f32.mrf.mxu0
    %v934 = vadd.f32 0.0, %v933
    %v935 = vpop.f32.mrf.mxu0
    %936 = vmatprep.mubr.f32.mxu0 0.0
    %937 = vmatmul.mubr.f32.gmra.mxu0 %v764
    %v938 = vpop.f32.mrf.mxu0
    %v939 = vadd.f32 0.0, %v938
    %v940 = vpop.f32.mrf.mxu0
    %941 = vmatprep.mubr.f32.mxu0 0.0
    %942 = vmatmul.mubr.f32.gmra.mxu0 %v767
    %v943 = vpop.f32.mrf.mxu0
    %v944 = vadd.f32 0.0, %v943
    %v945 = vpop.f32.mrf.mxu0
    %946 = vmatprep.mubr.f32.mxu0 0.0
    %947 = vmatmul.mubr.f32.gmra.mxu0 %v770
    %v948 = vpop.f32.mrf.mxu0
    %v949 = vadd.f32 0.0, %v948
    %v950 = vpop.f32.mrf.mxu0
    %951 = vmatprep.mubr.f32.mxu0 0.0
    %952 = vmatmul.mubr.f32.gmra.mxu0 %v773
    %v953 = vpop.f32.mrf.mxu0
    %v954 = vadd.f32 0.0, %v953
    %v955 = vpop.f32.mrf.mxu0
    %956 = vmatprep.mubr.f32.mxu0 0.0
    %957 = vmatmul.mubr.f32.gmra.mxu0 %v776
    %v958 = vpop.f32.mrf.mxu0
    %v959 = vadd.f32 0.0, %v958
    %v960 = vpop.f32.mrf.mxu0
    %961 = vmatprep.mubr.f32.mxu0 0.0
    %962 = vmatmul.mubr.f32.gmra.mxu0 %v779
    %v963 = vpop.f32.mrf.mxu0
    %v964 = vadd.f32 0.0, %v963
    %v965 = vpop.f32.mrf.mxu0
    %966 = vmatprep.mubr.f32.mxu0 0.0
    %967 = vmatmul.mubr.f32.gmra.mxu0 %v782
    %v968 = vpop.f32.mrf.mxu0
    %v969 = vadd.f32 0.0, %v968
    %v970 = vpop.f32.mrf.mxu0
    %971 = vmatprep.mubr.f32.mxu0 0.0
    %972 = vmatmul.mubr.f32.gmra.mxu0 %v785
    %v973 = vpop.f32.mrf.mxu0
    %v974 = vadd.f32 0.0, %v973
    %v975 = vpop.f32.mrf.mxu0
    %976 = vdwg.mxu0
    %977 = vst.msk [vmem:[%s9] sm:$0xff] %vm112, %v854
    %978 = vst.msk [vmem:[%s9 + $0x8] sm:$0xff] %vm112, %v859
    %979 = vst.msk [vmem:[%s9 + $0x10] sm:$0xff] %vm112, %v864
    %980 = vst.msk [vmem:[%s9 + $0x18] sm:$0xff] %vm112, %v869
    %981 = vst.msk [vmem:[%s9 + $0x20] sm:$0xff] %vm112, %v874
    %982 = vst.msk [vmem:[%s9 + $0x28] sm:$0xff] %vm112, %v879
    %983 = vst.msk [vmem:[%s9 + $0x30] sm:$0xff] %vm112, %v884
    %984 = vst.msk [vmem:[%s9 + $0x38] sm:$0xff] %vm112, %v889
    %985 = vst.msk [vmem:[%s9 + $0x40] sm:$0xff] %vm112, %v894
    %986 = vst.msk [vmem:[%s9 + $0x48] sm:$0xff] %vm112, %v899
    %987 = vst.msk [vmem:[%s9 + $0x50] sm:$0xff] %vm112, %v904
    %988 = vst.msk [vmem:[%s9 + $0x58] sm:$0xff] %vm112, %v909
    %989 = vst.msk [vmem:[%s9 + $0x60] sm:$0xff] %vm112, %v914
    %990 = vst.msk [vmem:[%s9 + $0x68] sm:$0xff] %vm112, %v919
    %991 = vst.msk [vmem:[%s9 + $0x70] sm:$0xff] %vm112, %v924
    %992 = vst.msk [vmem:[%s9 + $0x78] sm:$0xff] %vm112, %v929
    %993 = vst.msk [vmem:[%s9 + $0x80] sm:$0xff] %vm112, %v934
    %994 = vst.msk [vmem:[%s9 + $0x88] sm:$0xff] %vm112, %v939
    %995 = vst.msk [vmem:[%s9 + $0x90] sm:$0xff] %vm112, %v944
    %996 = vst.msk [vmem:[%s9 + $0x98] sm:$0xff] %vm112, %v949
    %997 = vst.msk [vmem:[%s9 + $0xa0] sm:$0xff] %vm112, %v954
    %998 = vst.msk [vmem:[%s9 + $0xa8] sm:$0xff] %vm112, %v959
    %999 = vst.msk [vmem:[%s9 + $0xb0] sm:$0xff] %vm112, %v964
    %1000 = vst.msk [vmem:[%s9 + $0xb8] sm:$0xff] %vm112, %v969
    %1001 = vst.msk [vmem:[%s9 + $0xc0] sm:$0xff] %vm112, %v974
    // Predicated region
    $region38: #{maf_forward.1} parent=1 // pred_check
      _
    $region39: #{maf_forward.1} parent=1 // pred_check_branch
      %1003 = sbr.rel (0) target = $region41
    $region40: #{maf_forward.1} parent=1 // pred_region
      _
    $region41: #{maf_forward.1} parent=1 // pred_fallthru
      _
    // Predicated region
    $region42: #{maf_forward.1} parent=1 // pred_check
      _
    $region43: #{maf_forward.1} parent=1 // pred_check_branch
      %1005 = sbr.rel (0) target = $region45
    $region44: #{maf_forward.1} parent=1 // pred_region
      %s1007 = ssub.s32 32, 32
      %1008 = vsyncadd [#allocation3], %s1007
      %s1010 = sshll.u32 [#allocation2], 4
      %s1011 = int_to_ptr.vmem [resolvable:$true] %s1010
      %1013 = dma.vmem_to_hbm [thread:$0]  %s1011, 32, %s10, [#allocation3]
    $region45: #{maf_forward.1} parent=1 // pred_fallthru
      _
    // Predicated region
    $region46: #{maf_forward.1} parent=1 // pred_check
      _
    $region47: #{maf_forward.1} parent=1 // pred_check_branch
      %1015 = sbr.rel (0) target = $region49
    $region48: #{maf_forward.1} parent=1 // pred_region
      _
    $region49: #{maf_forward.1} parent=1 // pred_fallthru
      _
    // Predicated region
    $region50: #{maf_forward.1} parent=1 // pred_check
      _
    $region51: #{maf_forward.1} parent=1 // pred_check_branch
      %1017 = sbr.rel (0) target = $region53
    $region52: #{maf_forward.1} parent=1 // pred_region
      %1018 = dma.done [#allocation3], 32
    $region53: #{maf_forward.1} parent=1 // pred_fallthru
      _
    %1019 = vsyncpa [#allocation3], 1

</llo_original>
